<compile_context>
chip_gen: v7x
topology: tpu7x:2x2x1
jax: 0.10.0
libtpu: 0.0.40
codegen_flags: <defaults>
</compile_context>

<pallas_src>
import jax
import jax.numpy as jnp
from jax.experimental import pallas as pl
from jax.experimental.pallas import tpu as pltpu


def _round_up(n, m):
    return ((n + m - 1) // m) * m


# ----------------------------- Pallas kernel --------------------------------
def _mlp_kernel(x_ref, w1_ref, b1_ref, w2_ref, b2_ref, pred_ref):
    # First layer: h = relu(x @ W1 + b1)   (bf16 MXU matmul, f32 accumulate)
    h = jnp.dot(x_ref[...], w1_ref[...], preferred_element_type=jnp.float32)
    h = jnp.maximum(h + b1_ref[...], 0.0)          # b1 is (1, H_p) -> row bcast

    # Second layer: pred = h @ W2 + b2   (activation recast to bf16 for MXU)
    p = jnp.dot(h.astype(w2_ref.dtype), w2_ref[...],
                preferred_element_type=jnp.float32)
    pred_ref[...] = (p + b2_ref[...]).astype(pred_ref.dtype)


# ----------------------------- model builder ---------------------------------
def make_mlp_model(w1, b1, w2, b2):
    """Builds the `model` inside ModelUnwrap.

    Weight padding / bf16 casting happens ONCE here (not per forward call).
    Returns a jitted callable x -> {"pred": ...} backed by one Pallas kernel.
    """
    D_in, H = w1.shape
    D_out = w2.shape[1]
    H_p = _round_up(H, 128)          # lane-dense hidden dim for the MXU / vregs

    # Pad/cast weights once.  Zero-padded hidden columns/rows stay zero through
    # relu and contribute nothing to the second matmul.
    w1p = jnp.zeros((D_in, H_p), jnp.bfloat16).at[:, :H].set(
        w1.astype(jnp.bfloat16))
    b1p = jnp.zeros((1, H_p), jnp.float32).at[0, :H].set(
        b1.reshape(-1).astype(jnp.float32))
    w2p = jnp.zeros((H_p, D_out), jnp.bfloat16).at[:H, :].set(
        w2.astype(jnp.bfloat16))
    b2p = b2.reshape(1, D_out).astype(jnp.float32)

    @jax.jit
    def model(x):
        B = x.shape[0]

        # Batch tiling: single block for small B; for large B use tiles up to
        # 512 rows but keep >= 2 grid steps so v7x megacore can shard them.
        if B <= 128:
            TM = _round_up(B, 8)
            B_p = TM
        else:
            TM = min(512, _round_up((B + 1) // 2, 8))
            B_p = _round_up(B, TM)

        xp = x.astype(jnp.bfloat16)
        if B_p != B:                               # pad batch only when needed
            xp = jnp.zeros((B_p, D_in), jnp.bfloat16).at[:B].set(xp)

        grid = (B_p // TM,)

        cost = pl.CostEstimate(
            flops=2 * B_p * (D_in * H_p + H_p * D_out),
            transcendentals=0,
            bytes_accessed=(B_p * D_in * 2            # x (bf16)
                            + D_in * H_p * 2          # W1 (bf16)
                            + H_p * 4                 # b1 (f32)
                            + H_p * D_out * 2         # W2 (bf16)
                            + D_out * 4               # b2 (f32)
                            + B_p * D_out * 4),       # pred (f32)
        )

        pred_p = pl.pallas_call(
            _mlp_kernel,
            out_shape=jax.ShapeDtypeStruct((B_p, D_out), jnp.float32),
            grid=grid,
            in_specs=[
                pl.BlockSpec((TM, D_in), lambda i: (i, 0)),   # x tile per step
                pl.BlockSpec((D_in, H_p), lambda i: (0, 0)),  # W1 resident
                pl.BlockSpec((1, H_p), lambda i: (0, 0)),     # b1 resident
                pl.BlockSpec((H_p, D_out), lambda i: (0, 0)), # W2 resident
                pl.BlockSpec((1, D_out), lambda i: (0, 0)),   # b2 resident
            ],
            out_specs=pl.BlockSpec((TM, D_out), lambda i: (i, 0)),
            compiler_params=pltpu.CompilerParams(
                dimension_semantics=("parallel",),  # batch tiles -> both TCs on v7x
            ),
            cost_estimate=cost,
        )(xp, w1p, b1p, w2p, b2p)

        pred = pred_p[:B] if B_p != B else pred_p
        return {"pred": pred}

    return model


# ----------------------------- ModelUnwrap -----------------------------------
class ModelUnwrap:
    """JAX equivalent of the PyTorch ModelUnwrap wrapper."""

    def __init__(self, model, read_pred):
        self.model = model
        self.read_pred = read_pred

    def __call__(self, *args, **kwargs):
        return self.read_pred(self.model(*args, **kwargs))


# ------------------------------- main ----------------------------------------
if __name__ == "__main__":
    key = jax.random.PRNGKey(0)
    k_x, k_w1, k_b1, k_w2, k_b2, k_x2 = jax.random.split(key, 6)

    B, D_in, H, D_out = 8, 32, 64, 32   # small logical shapes

    x = jax.random.normal(k_x, (B, D_in), dtype=jnp.float32)
    w1 = jax.random.normal(k_w1, (D_in, H), dtype=jnp.float32) * 0.1
    b1 = jax.random.normal(k_b1, (H,), dtype=jnp.float32) * 0.1
    w2 = jax.random.normal(k_w2, (H, D_out), dtype=jnp.float32) * 0.1
    b2 = jax.random.normal(k_b2, (D_out,), dtype=jnp.float32) * 0.1

    # model: Pallas-backed MLP returning a dict; read_pred: pick "pred".
    model = make_mlp_model(w1, b1, w2, b2)
    read_pred = lambda out: out["pred"]

    unwrapped = ModelUnwrap(model, read_pred)

    def ref_fn(inp):
        h_ref = jnp.maximum(inp @ w1 + b1[None, :], 0.0)
        return h_ref @ w2 + b2[None, :]

    # --- small batch (single-block path) ---
    pred = jax.block_until_ready(unwrapped(x))
    assert pred.shape == (B, D_out)
    assert jnp.allclose(pred, ref_fn(x), atol=5e-2, rtol=5e-2), (
        float(jnp.max(jnp.abs(pred - ref_fn(x)))))

    # --- larger batch (multi-step, megacore-shardable path) ---
    B2 = 320
    x2 = jax.random.normal(k_x2, (B2, D_in), dtype=jnp.float32)
    pred2 = jax.block_until_ready(unwrapped(x2))
    assert pred2.shape == (B2, D_out)
    assert jnp.allclose(pred2, ref_fn(x2), atol=5e-2, rtol=5e-2), (
        float(jnp.max(jnp.abs(pred2 - ref_fn(x2)))))

    print("KERNEL_OK")
</pallas_src>

<mosaic_0001>
module attributes {stable_mosaic.version = 11 : i64} {
  func.func @_mlp_kernel(%arg0: i32, %arg1: memref<8x32xbf16, #tpu.memory_space<vmem>>, %arg2: memref<32x128xbf16, #tpu.memory_space<vmem>>, %arg3: memref<1x128xf32, #tpu.memory_space<vmem>>, %arg4: memref<128x32xbf16, #tpu.memory_space<vmem>>, %arg5: memref<1x32xf32, #tpu.memory_space<vmem>>, %arg6: memref<8x32xf32, #tpu.memory_space<vmem>>) attributes {dimension_semantics = [#tpu.dimension_semantics<parallel>], iteration_bounds = array<i64: 1>, scalar_prefetch = 0 : i64, scratch_operands = 0 : i64, tpu.core_type = #tpu.core_type<tc>, window_params = [{transform_indices = @transform_0, window_bounds = array<i64: 8, 32>}, {pipeline_mode = #tpu.pipeline_mode<synchronous>, transform_indices = @transform_1, window_bounds = array<i64: 32, 128>}, {pipeline_mode = #tpu.pipeline_mode<synchronous>, transform_indices = @transform_2, window_bounds = array<i64: 1, 128>}, {pipeline_mode = #tpu.pipeline_mode<synchronous>, transform_indices = @transform_3, window_bounds = array<i64: 128, 32>}, {pipeline_mode = #tpu.pipeline_mode<synchronous>, transform_indices = @transform_4, window_bounds = array<i64: 1, 32>}, {transform_indices = @transform_5, window_bounds = array<i64: 8, 32>}]} {
    %c0 = arith.constant 0 : index
    %c0_0 = arith.constant 0 : index
    %0 = vector.load %arg1[%c0, %c0_0] : memref<8x32xbf16, #tpu.memory_space<vmem>>, vector<8x32xbf16>
    %c0_1 = arith.constant 0 : index
    %c0_2 = arith.constant 0 : index
    %1 = vector.load %arg2[%c0_1, %c0_2] : memref<32x128xbf16, #tpu.memory_space<vmem>>, vector<32x128xbf16>
    %cst = arith.constant dense<0.000000e+00> : vector<8x128xf32>
    %2 = tpu.matmul %0, %1, %cst {dimension_numbers = #tpu.dot_dimension_numbers<[1], [0], [0], [1], [0, 0, 1, 1], [], []>} : vector<8x32xbf16>, vector<32x128xbf16>, vector<8x128xf32> -> vector<8x128xf32>
    %c0_3 = arith.constant 0 : index
    %c0_4 = arith.constant 0 : index
    %3 = vector.load %arg3[%c0_3, %c0_4] : memref<1x128xf32, #tpu.memory_space<vmem>>, vector<1x128xf32>
    %4 = vector.broadcast %3 : vector<1x128xf32> to vector<8x128xf32>
    %5 = arith.addf %2, %4 : vector<8x128xf32>
    %cst_5 = arith.constant 0.000000e+00 : f32
    %6 = vector.broadcast %cst_5 : f32 to vector<8x128xf32>
    %7 = arith.maximumf %5, %6 : vector<8x128xf32>
    %8 = arith.truncf %7 : vector<8x128xf32> to vector<8x128xbf16>
    %c0_6 = arith.constant 0 : index
    %c0_7 = arith.constant 0 : index
    %9 = vector.load %arg4[%c0_6, %c0_7] : memref<128x32xbf16, #tpu.memory_space<vmem>>, vector<128x32xbf16>
    %cst_8 = arith.constant dense<0.000000e+00> : vector<8x32xf32>
    %10 = tpu.matmul %8, %9, %cst_8 {dimension_numbers = #tpu.dot_dimension_numbers<[1], [0], [0], [1], [0, 0, 1, 1], [], []>} : vector<8x128xbf16>, vector<128x32xbf16>, vector<8x32xf32> -> vector<8x32xf32>
    %c0_9 = arith.constant 0 : index
    %c0_10 = arith.constant 0 : index
    %11 = vector.load %arg5[%c0_9, %c0_10] : memref<1x32xf32, #tpu.memory_space<vmem>>, vector<1x32xf32>
    %12 = vector.broadcast %11 : vector<1x32xf32> to vector<8x32xf32>
    %13 = arith.addf %10, %12 : vector<8x32xf32>
    %c0_11 = arith.constant 0 : index
    %c0_12 = arith.constant 0 : index
    %14 = vector.load %arg6[%c0_11, %c0_12] : memref<8x32xf32, #tpu.memory_space<vmem>>, vector<8x32xf32>
    tpu.vector_store %arg6[%c0_11, %c0_12], %13 {strides = array<i32>} : memref<8x32xf32, #tpu.memory_space<vmem>>, vector<8x32xf32>,
    return
  }
  func.func @transform_0(%arg0: i32) -> (i32, i32) {
    %c0_i32 = arith.constant 0 : i32
    %c0_i32_0 = arith.constant 0 : i32
    return %arg0, %c0_i32 : i32, i32
  }
  func.func @transform_1(%arg0: i32) -> (i32, i32) {
    %c0_i32 = arith.constant 0 : i32
    %c0_i32_0 = arith.constant 0 : i32
    %c0_i32_1 = arith.constant 0 : i32
    return %c0_i32, %c0_i32_0 : i32, i32
  }
  func.func @transform_2(%arg0: i32) -> (i32, i32) {
    %c0_i32 = arith.constant 0 : i32
    %c0_i32_0 = arith.constant 0 : i32
    %c0_i32_1 = arith.constant 0 : i32
    return %c0_i32, %c0_i32_0 : i32, i32
  }
  func.func @transform_3(%arg0: i32) -> (i32, i32) {
    %c0_i32 = arith.constant 0 : i32
    %c0_i32_0 = arith.constant 0 : i32
    %c0_i32_1 = arith.constant 0 : i32
    return %c0_i32, %c0_i32_0 : i32, i32
  }
  func.func @transform_4(%arg0: i32) -> (i32, i32) {
    %c0_i32 = arith.constant 0 : i32
    %c0_i32_0 = arith.constant 0 : i32
    %c0_i32_1 = arith.constant 0 : i32
    return %c0_i32, %c0_i32_0 : i32, i32
  }
  func.func @transform_5(%arg0: i32) -> (i32, i32) {
    %c0_i32 = arith.constant 0 : i32
    %c0_i32_0 = arith.constant 0 : i32
    return %arg0, %c0_i32 : i32, i32
  }
}

</mosaic_0001>

<llo_original>
// kernel: model.1
$region0: #{model.1}
  #allocation0 [shape = 'u32[]', space=smem, size = 0x4, offset = 0x4, fixed_abs, tag = 'smem constant byte address 0x4 - core index']
  #allocation1 [shape = 'u32[144,128]{1,0:T(1,128)}', space=vmem, size = 0x12000, scoped, tag = 'internal scratch']
  %s0 = inlined_call_operand.vmem [shape: bf16[8,32], index: 0, kind: input, shape index: {}]
  %s1 = inlined_call_operand.vmem [shape: bf16[32,128], index: 1, kind: input, shape index: {}]
  %s2 = inlined_call_operand.vmem [shape: f32[1,128], index: 2, kind: input, shape index: {}]
  %s3 = inlined_call_operand.hbm [shape: bf16[128,32], index: 3, kind: input, shape index: {}]
  %s4 = inlined_call_operand.vmem [shape: f32[1,32], index: 4, kind: input, shape index: {}]
  %s5 = inlined_call_operand.hbm [shape: f32[8,32], index: 5, kind: output, shape index: {}]
  %s6 = sld [smem:[#allocation0]]
  $region34: #{model.1} parent=0
    _
  %s8 = ssub.s32 1, %s6
  %s9 = scalar_select 0, %s8, %s6
  $region1: #{model.1} parent=0
    #allocation2 [shape = 'u8[32768]{0}', space=vmem, size = 0x8000, scoped, tag = 'input window, operand 3, single buffered']
    #allocation3 [shape = 's32[1]{0}', space=sflag, size = 0x4, scoped, tag = 'scoped memory for model.1']
    #allocation4 [shape = 's32[1]{0}', space=sflag, size = 0x4, scoped, tag = 'scoped memory for model.1']
    #allocation5 [shape = 'u8[4096]{0}', space=vmem, size = 0x1000, scoped, tag = 'output window, operand 0, single buffered']
    %10 = vsyncpa [#allocation3], 0
    %11 = vsyncpa [#allocation4], 0
    // Predicated region
    $region2: #{model.1} parent=1 // pred_check
      _
    $region3: #{model.1} parent=1 // pred_check_branch
      %13 = sbr.rel (0) target = $region5
    $region4: #{model.1} parent=1 // pred_region
      _
    $region5: #{model.1} parent=1 // pred_fallthru
      _
    // Predicated region
    $region6: #{model.1} parent=1 // pred_check
      _
    $region7: #{model.1} parent=1 // pred_check_branch
      %15 = sbr.rel (0) target = $region9
    $region8: #{model.1} parent=1 // pred_region
      _
    $region9: #{model.1} parent=1 // pred_fallthru
      _
    // Predicated region
    $region10: #{model.1} parent=1 // pred_check
      _
    $region11: #{model.1} parent=1 // pred_check_branch
      %17 = sbr.rel (0) target = $region13
    $region12: #{model.1} parent=1 // pred_region
      _
    $region13: #{model.1} parent=1 // pred_fallthru
      _
    // Predicated region
    $region14: #{model.1} parent=1 // pred_check
      _
    $region15: #{model.1} parent=1 // pred_check_branch
      %19 = sbr.rel (0) target = $region17
    $region16: #{model.1} parent=1 // pred_region
      %s21 = ssub.s32 1024, 1024
      %22 = vsyncadd [#allocation3], %s21
      %s23 = sshll.u32 [#allocation2], 4
      %s24 = int_to_ptr.vmem [resolvable:$true] %s23
      %29 = dma.hbm_to_vmem [thread:$0]  %s3, 1024, %s24, [#allocation3], 64, 64, 4
    $region17: #{model.1} parent=1 // pred_fallthru
      _
    // Predicated region
    $region18: #{model.1} parent=1 // pred_check
      _
    $region19: #{model.1} parent=1 // pred_check_branch
      %31 = sbr.rel (0) target = $region21
    $region20: #{model.1} parent=1 // pred_region
      _
    $region21: #{model.1} parent=1 // pred_fallthru
      _
    // Predicated region
    $region22: #{model.1} parent=1 // pred_check
      _
    $region23: #{model.1} parent=1 // pred_check_branch
      %33 = sbr.rel (0) target = $region25
    $region24: #{model.1} parent=1 // pred_region
      %34 = dma.done [#allocation3], 1024
    $region25: #{model.1} parent=1 // pred_fallthru
      _
    %v36 = vld [vmem:[%s0] sm:$0xf]
    %v37 = vld [vmem:[%s1] sm:$0xf]
    %v38 = vld [vmem:[%s1 + $0x4] sm:$0xf]
    %v39 = vld [vmem:[%s1 + $0x8] sm:$0xf]
    %v40 = vld [vmem:[%s1 + $0xc] sm:$0xf]
    %v41 = vld [vmem:[%s2] sm:$0x1]
    %v43 = vlaneseq
    %v44 = vshrl.u32 %v43, 7
    %v45 = vsub.s32 0, %v44
    %v46 = vrot.slane %v41, %v45
    %v52 = vunpack.c.l.b16 %v37
    %v53 = vunpack.c.l.b16 %v38
    %v54 = vunpack.c.l.b16 %v39
    %v55 = vunpack.c.l.b16 %v40
    %v56 = vpack.c.b16 %v53, %v52
    %v57 = vpack.c.b16 %v55, %v54
    %vm60 = vcmask 261120
    %v62 = vsel %vm60, %v36, 0
    %64 = vmatprep.subr.bf16.mxu0 0
    %65 = vmatpush1.bf16.msra.mxu0 %v56
    %66 = vmatprep.subr.bf16.mxu0 0
    %67 = vmatpush1.bf16.msra.mxu0 %v57
    %68 = vmatprep.subr.bf16.mxu0 0
    %69 = vmatpush1.bf16.msra.mxu0 0
    %70 = vmatprep.subr.bf16.mxu0 0
    %71 = vmatpush1.bf16.msra.mxu0 0
    %72 = vmatprep.subr.bf16.mxu0 0
    %73 = vmatpush1.bf16.msra.mxu0 0
    %74 = vmatprep.subr.bf16.mxu0 0
    %75 = vmatpush1.bf16.msra.mxu0 0
    %76 = vmatprep.subr.bf16.mxu0 0
    %77 = vmatpush1.bf16.msra.mxu0 0
    %78 = vmatprep.subr.bf16.mxu0 0
    %79 = vmatpush1.bf16.msra.mxu0 0
    %80 = vmatprep.subr.bf16.mxu0 0
    %81 = vmatpush1.bf16.msra.mxu0 0
    %82 = vmatprep.subr.bf16.mxu0 0
    %83 = vmatpush1.bf16.msra.mxu0 0
    %84 = vmatprep.subr.bf16.mxu0 0
    %85 = vmatpush1.bf16.msra.mxu0 0
    %86 = vmatprep.subr.bf16.mxu0 0
    %87 = vmatpush1.bf16.msra.mxu0 0
    %88 = vmatprep.subr.bf16.mxu0 0
    %89 = vmatpush1.bf16.msra.mxu0 0
    %90 = vmatprep.subr.bf16.mxu0 0
    %91 = vmatpush1.bf16.msra.mxu0 0
    %92 = vmatprep.subr.bf16.mxu0 0
    %93 = vmatpush1.bf16.msra.mxu0 0
    %94 = vmatprep.subr.bf16.mxu0 0
    %95 = vmatpush1.bf16.msra.mxu0 0
    %96 = vmatprep.mubr.bf16.mxu0 0
    %97 = vmatmul.mubr.bf16.gmra.mrb[0].mxu0 %v62
    %v98 = vpop.f32.mrb[0].mxu0
    %v99 = vadd.f32 %v46, %v98
    %v100 = vpop.f32.mrb[0].mxu0
    %v101 = vpop.f32.mrb[0].mxu0
    %v102 = vpop.f32.mrb[0].mxu0
    %103 = vdwg.mxu0
    %v104 = vmax.f32 %v99, 0.0
    %v105 = vpack.c.bf16 %v104, %v104
    %v106 = vld [vmem:[#allocation2] sm:$0xf]
    %v107 = vld [vmem:[#allocation2 + $0x4] sm:$0xf]
    %v108 = vld [vmem:[#allocation2 + $0x8] sm:$0xf]
    %v109 = vld [vmem:[#allocation2 + $0xc] sm:$0xf]
    %v110 = vld [vmem:[#allocation2 + $0x10] sm:$0xf]
    %v111 = vld [vmem:[#allocation2 + $0x14] sm:$0xf]
    %v112 = vld [vmem:[#allocation2 + $0x18] sm:$0xf]
    %v113 = vld [vmem:[#allocation2 + $0x1c] sm:$0xf]
    %v114 = vld [vmem:[#allocation2 + $0x20] sm:$0xf]
    %v115 = vld [vmem:[#allocation2 + $0x24] sm:$0xf]
    %v116 = vld [vmem:[#allocation2 + $0x28] sm:$0xf]
    %v117 = vld [vmem:[#allocation2 + $0x2c] sm:$0xf]
    %v118 = vld [vmem:[#allocation2 + $0x30] sm:$0xf]
    %v119 = vld [vmem:[#allocation2 + $0x34] sm:$0xf]
    %v120 = vld [vmem:[#allocation2 + $0x38] sm:$0xf]
    %v121 = vld [vmem:[#allocation2 + $0x3c] sm:$0xf]
    %v122 = vld [vmem:[%s4] sm:$0x1]
    %v124 = vlaneseq
    %v125 = vshrl.u32 %v124, 7
    %v126 = vsub.s32 0, %v125
    %v127 = vrot.slane %v122, %v126
    %v145 = vunpack.c.l.b16 %v106
    %v146 = vunpack.c.l.b16 %v107
    %v147 = vunpack.c.l.b16 %v108
    %v148 = vunpack.c.l.b16 %v109
    %v149 = vunpack.c.l.b16 %v110
    %v150 = vunpack.c.l.b16 %v111
    %v151 = vunpack.c.l.b16 %v112
    %v152 = vunpack.c.l.b16 %v113
    %v153 = vunpack.c.l.b16 %v114
    %v154 = vunpack.c.l.b16 %v115
    %v155 = vunpack.c.l.b16 %v116
    %v156 = vunpack.c.l.b16 %v117
    %v157 = vunpack.c.l.b16 %v118
    %v158 = vunpack.c.l.b16 %v119
    %v159 = vunpack.c.l.b16 %v120
    %v160 = vunpack.c.l.b16 %v121
    %v161 = vpack.c.b16 %v146, %v145
    %v162 = vpack.c.b16 %v148, %v147
    %v163 = vpack.c.b16 %v150, %v149
    %v164 = vpack.c.b16 %v152, %v151
    %v165 = vpack.c.b16 %v154, %v153
    %v166 = vpack.c.b16 %v156, %v155
    %v167 = vpack.c.b16 %v158, %v157
    %v168 = vpack.c.b16 %v160, %v159
    %177 = vmatprep.subr.bf16.mxu0 0
    %178 = vmatpush1.bf16.msra.mxu0 %v161
    %179 = vmatprep.subr.bf16.mxu0 0
    %180 = vmatpush1.bf16.msra.mxu0 %v162
    %181 = vmatprep.subr.bf16.mxu0 0
    %182 = vmatpush1.bf16.msra.mxu0 %v163
    %183 = vmatprep.subr.bf16.mxu0 0
    %184 = vmatpush1.bf16.msra.mxu0 %v164
    %185 = vmatprep.subr.bf16.mxu0 0
    %186 = vmatpush1.bf16.msra.mxu0 %v165
    %187 = vmatprep.subr.bf16.mxu0 0
    %188 = vmatpush1.bf16.msra.mxu0 %v166
    %189 = vmatprep.subr.bf16.mxu0 0
    %190 = vmatpush1.bf16.msra.mxu0 %v167
    %191 = vmatprep.subr.bf16.mxu0 0
    %192 = vmatpush1.bf16.msra.mxu0 %v168
    %193 = vmatprep.subr.bf16.mxu0 0
    %194 = vmatpush1.bf16.msra.mxu0 0
    %195 = vmatprep.subr.bf16.mxu0 0
    %196 = vmatpush1.bf16.msra.mxu0 0
    %197 = vmatprep.subr.bf16.mxu0 0
    %198 = vmatpush1.bf16.msra.mxu0 0
    %199 = vmatprep.subr.bf16.mxu0 0
    %200 = vmatpush1.bf16.msra.mxu0 0
    %201 = vmatprep.subr.bf16.mxu0 0
    %202 = vmatpush1.bf16.msra.mxu0 0
    %203 = vmatprep.subr.bf16.mxu0 0
    %204 = vmatpush1.bf16.msra.mxu0 0
    %205 = vmatprep.subr.bf16.mxu0 0
    %206 = vmatpush1.bf16.msra.mxu0 0
    %207 = vmatprep.subr.bf16.mxu0 0
    %208 = vmatpush1.bf16.msra.mxu0 0
    %209 = vmatprep.mubr.bf16.mxu0 0
    %210 = vmatmul.mubr.bf16.gmra.mrb[0].mxu0 %v105
    %v211 = vpop.f32.mrb[0].mxu0
    %v212 = vadd.f32 %v127, %v211
    %v213 = vpop.f32.mrb[0].mxu0
    %v214 = vpop.f32.mrb[0].mxu0
    %v215 = vpop.f32.mrb[0].mxu0
    %216 = vdwg.mxu0
    %217 = vst.msk [vmem:[#allocation5] sm:$0xff] %vm60, %v212
    // Predicated region
    $region26: #{model.1} parent=1 // pred_check
      _
    $region27: #{model.1} parent=1 // pred_check_branch
      %219 = sbr.rel (0) target = $region29
    $region28: #{model.1} parent=1 // pred_region
      %s221 = ssub.s32 128, 128
      %222 = vsyncadd [#allocation4], %s221
      %s224 = sshll.u32 [#allocation5], 4
      %s225 = int_to_ptr.vmem [resolvable:$true] %s224
      %227 = dma.vmem_to_hbm [thread:$0]  %s225, 128, %s5, [#allocation4]
    $region29: #{model.1} parent=1 // pred_fallthru
      _
    // Predicated region
    $region30: #{model.1} parent=1 // pred_check
      _
    $region31: #{model.1} parent=1 // pred_check_branch
      %229 = sbr.rel (0) target = $region33
    $region32: #{model.1} parent=1 // pred_region
      %230 = dma.done [#allocation4], 128
    $region33: #{model.1} parent=1 // pred_fallthru
      _
    %231 = vsyncpa [#allocation3], 1
    %232 = vsyncpa [#allocation4], 1

</llo_original>
